<compile_context>
chip_gen: v5e
topology: v5e:2x2
jax: 0.10.0
libtpu: 0.0.40
codegen_flags: <defaults>
</compile_context>

<pallas_src>
import functools

import jax
import jax.numpy as jnp
from jax import lax
from jax.experimental import pallas as pl
from jax.experimental.pallas import tpu as pltpu


def _vmem_capacity_bytes():
    """Physical VMEM of the local TPU; conservative (v7x) fallback."""
    try:
        info = pltpu.get_tpu_info()
        for attr in ("vmem_capacity_bytes", "vmem_size_bytes", "vmem_bytes"):
            v = getattr(info, attr, None)
            if v:
                return int(v)
    except Exception:
        pass
    return 64 << 20


def _pick_token_tile(n, c, itemsize, vmem_cap, token_tile):
    """Largest multiple-of-8 token tile whose VMEM footprint fits the budget."""
    c_pad = ((c + 127) // 128) * 128  # lane padding of the class dim in VMEM
    # Per-row bytes: double-buffered logits block in native dtype plus ~3 f32
    # (TN, C) temporaries (f32 cast, x - max / exp) and one int32 lane iota.
    per_row = c_pad * (2 * itemsize + 4 * 4) + 64
    # Tile budget: generous on 128 MiB parts (v5e/v6e), conservative on v7x
    # (64 MiB) after leaving headroom for compiler/internal scratch.
    budget = max(8 << 20, min((vmem_cap - (16 << 20)) // 2, 48 << 20))
    tn = budget // per_row if token_tile is None else int(token_tile)
    tn = max(8, (min(tn, 1 << 14) // 8) * 8)
    if n < 8:
        return n                               # full-dim block (allowed)
    cap = n if n % 8 == 0 else (n // 8) * 8
    return min(tn, cap)


def _mlm_loss_kernel(logits_ref, targets_ref, weights_ref,
                     loss_ref, hit_ref, *,
                     n_tokens, label_smoothing, unmasked_weight):
    ti = pl.program_id(1)

    x = logits_ref[0].astype(jnp.float32)                 # (TN, C)
    tn, c = x.shape
    lbl = targets_ref[0]                                   # (TN, 1) int32
    w = weights_ref[0].astype(jnp.float32)                 # (TN, 1)

    # valid-token mask for the ragged last tile (jnp.where, not multiply, so
    # garbage rows cannot produce inf*0 = NaN)
    row_ids = ti * tn + lax.broadcasted_iota(jnp.int32, (tn, 1), 0)
    valid = row_ids < n_tokens                              # (TN, 1) bool

    # lane iota reused by the label gather and the exact argmax
    iota_c = lax.broadcasted_iota(jnp.int32, (tn, c), 1)

    # numerically stable logsumexp
    row_max = jnp.max(x, axis=-1, keepdims=True)                    # (TN, 1)
    lse = row_max + jnp.log(
        jnp.sum(jnp.exp(x - row_max), axis=-1, keepdims=True))      # (TN, 1)

    # fused label gather: sum(where(col == label, x, 0))
    x_label = jnp.sum(jnp.where(iota_c == lbl, x, 0.0),
                      axis=-1, keepdims=True)                       # (TN, 1)

    eps = label_smoothing
    if eps != 0.0:
        x_mean = jnp.sum(x, axis=-1, keepdims=True) * (1.0 / c)
        ce = lse - (1.0 - eps) * x_label - eps * x_mean
    else:
        ce = lse - x_label

    lw = (1.0 - w) * unmasked_weight + w

    # exact torch.argmax semantics: first class index attaining the row max
    amax = jnp.min(jnp.where(x >= row_max, iota_c, c),
                   axis=-1, keepdims=True)                          # (TN, 1)
    hit = (amax == lbl).astype(jnp.float32)

    # per-tile partial rows; no accumulation, no init branch
    loss_ref[0] = jnp.where(valid, ce * lw, 0.0)
    hit_ref[0] = jnp.where(valid, hit * w, 0.0)


@functools.partial(
    jax.jit,
    static_argnames=("label_smoothing", "loss_weight_unmasked_token",
                     "token_tile"))
def mlm_loss(logits, targets, weights, *, label_smoothing=0.0,
             loss_weight_unmasked_token=0.1, token_tile=None):
    """Equivalent of MLMLoss.forward.

    logits: (B, N, C) float (any dtype; cast inside kernel)
    targets: (B, N) int, weights: (B, N) float (mask: 1 = masked token)
    Returns (loss, {'loss': loss, 'correct_tokens': correct_tokens}).
    """
    b, n, c = logits.shape
    itemsize = jnp.dtype(logits.dtype).itemsize
    vmem_cap = _vmem_capacity_bytes()

    tn = _pick_token_tile(n, c, itemsize, vmem_cap, token_tile)
    n_tiles = pl.cdiv(n, tn)

    # small side arrays (tiny HBM traffic); logits are passed through untouched
    tgt = targets.reshape(b, n, 1).astype(jnp.int32)
    wts = weights.reshape(b, n, 1).astype(jnp.float32)

    kernel = functools.partial(
        _mlm_loss_kernel,
        n_tokens=n,
        label_smoothing=float(label_smoothing),
        unmasked_weight=float(loss_weight_unmasked_token))

    # VMEM estimate including in-kernel f32/int32 temporaries and lane padding
    c_pad = ((c + 127) // 128) * 128
    need = tn * c_pad * (2 * itemsize + 4 * 4) + (4 << 20)
    vmem_limit = int(max(16 << 20,
                         min(vmem_cap - (16 << 20),
                             max(int(need * 1.25), 32 << 20))))

    loss_rows, hit_rows = pl.pallas_call(
        kernel,
        out_shape=(jax.ShapeDtypeStruct((b, n_tiles * tn, 1), jnp.float32),
                   jax.ShapeDtypeStruct((b, n_tiles * tn, 1), jnp.float32)),
        grid=(b, n_tiles),
        in_specs=[
            pl.BlockSpec((1, tn, c), lambda bi, ti: (bi, ti, 0)),
            pl.BlockSpec((1, tn, 1), lambda bi, ti: (bi, ti, 0)),
            pl.BlockSpec((1, tn, 1), lambda bi, ti: (bi, ti, 0)),
        ],
        out_specs=(
            pl.BlockSpec((1, tn, 1), lambda bi, ti: (bi, ti, 0)),
            pl.BlockSpec((1, tn, 1), lambda bi, ti: (bi, ti, 0)),
        ),
        compiler_params=pltpu.CompilerParams(
            dimension_semantics=("parallel", "parallel"),
            vmem_limit_bytes=vmem_limit),
    )(logits, tgt, wts)

    # tiny reductions / denominators in plain JAX (B*N elements only);
    # padded rows beyond N were written as exact zeros by the kernel.
    wf = weights.astype(jnp.float32)
    lw = (1.0 - wf) * loss_weight_unmasked_token + wf
    loss = loss_rows.sum() / (lw.sum() + 1e-8)
    correct_tokens = jnp.mean(
        hit_rows.sum(axis=(1, 2)) / (wf.sum(axis=1) + 1e-8))
    # TODO(synk): weights=None default of the torch module is unsupported
    # (the torch code itself would fail on None); weights are required here.
    return loss, {"loss": loss, "correct_tokens": correct_tokens}


if __name__ == "__main__":
    # small MLM-consistent shapes: batch=2, tokens=20 (ragged vs 8-multiples to
    # exercise the masked last tile), codebook size=32
    B, N, C = 2, 20, 32
    EPS = 0.1
    UNMASKED_W = 0.1

    key = jax.random.PRNGKey(0)
    k_logits, k_targets, k_weights = jax.random.split(key, 3)
    logits = jax.random.normal(k_logits, (B, N, C), dtype=jnp.float32)
    targets = jax.random.randint(k_targets, (B, N), 0, C, dtype=jnp.int32)
    weights = jax.random.bernoulli(k_weights, 0.5, (B, N)).astype(jnp.float32)

    loss, aux = mlm_loss(logits, targets, weights,
                         label_smoothing=EPS,
                         loss_weight_unmasked_token=UNMASKED_W)
    jax.block_until_ready((loss, aux))

    # plain-JAX reference (torch CrossEntropyLoss w/ label smoothing semantics)
    x = logits.astype(jnp.float32)
    logp = jax.nn.log_softmax(x, axis=-1)
    nll = -jnp.take_along_axis(logp, targets[..., None], axis=-1)[..., 0]
    smooth = -logp.mean(axis=-1)
    ce = (1.0 - EPS) * nll + EPS * smooth
    lw = (1.0 - weights) * UNMASKED_W + weights
    ref_loss = (ce * lw).sum() / (lw.sum() + 1e-8)
    pred = jnp.argmax(x, axis=-1)
    ref_acc = jnp.mean(((pred == targets) * weights).sum(axis=1)
                       / (weights.sum(axis=1) + 1e-8))

    assert jnp.allclose(loss, ref_loss, atol=1e-5, rtol=1e-4), (loss, ref_loss)
    assert jnp.allclose(aux["correct_tokens"], ref_acc, atol=1e-6), (
        aux["correct_tokens"], ref_acc)

    print("KERNEL_OK")
</pallas_src>

<mosaic_0001>
module attributes {stable_mosaic.version = 11 : i64} {
  func.func @_mlm_loss_kernel(%arg0: i32, %arg1: i32, %arg2: memref<1x16x32xf32, #tpu.memory_space<vmem>>, %arg3: memref<1x16x1xi32, #tpu.memory_space<vmem>>, %arg4: memref<1x16x1xf32, #tpu.memory_space<vmem>>, %arg5: memref<1x16x1xf32, #tpu.memory_space<vmem>>, %arg6: memref<1x16x1xf32, #tpu.memory_space<vmem>>) attributes {dimension_semantics = [#tpu.dimension_semantics<parallel>, #tpu.dimension_semantics<parallel>], iteration_bounds = array<i64: 2, 2>, scalar_prefetch = 0 : i64, scratch_operands = 0 : i64, tpu.core_type = #tpu.core_type<tc>, window_params = [{transform_indices = @transform_0, window_bounds = array<i64: 1, 16, 32>}, {transform_indices = @transform_1, window_bounds = array<i64: 1, 16, 1>}, {transform_indices = @transform_2, window_bounds = array<i64: 1, 16, 1>}, {transform_indices = @transform_3, window_bounds = array<i64: 1, 16, 1>}, {transform_indices = @transform_4, window_bounds = array<i64: 1, 16, 1>}]} {
    %c0 = arith.constant 0 : index
    %c0_0 = arith.constant 0 : index
    %c0_1 = arith.constant 0 : index
    %0 = vector.load %arg2[%c0, %c0_0, %c0_1] : memref<1x16x32xf32, #tpu.memory_space<vmem>>, vector<1x16x32xf32>
    %1 = vector.shape_cast %0 : vector<1x16x32xf32> to vector<16x32xf32>
    %c0_2 = arith.constant 0 : index
    %c0_3 = arith.constant 0 : index
    %c0_4 = arith.constant 0 : index
    %2 = vector.load %arg3[%c0_2, %c0_3, %c0_4] : memref<1x16x1xi32, #tpu.memory_space<vmem>>, vector<1x16x1xi32>
    %3 = vector.shape_cast %2 : vector<1x16x1xi32> to vector<16x1xi32>
    %c0_5 = arith.constant 0 : index
    %c0_6 = arith.constant 0 : index
    %c0_7 = arith.constant 0 : index
    %4 = vector.load %arg4[%c0_5, %c0_6, %c0_7] : memref<1x16x1xf32, #tpu.memory_space<vmem>>, vector<1x16x1xf32>
    %5 = vector.shape_cast %4 : vector<1x16x1xf32> to vector<16x1xf32>
    %c16_i32 = arith.constant 16 : i32
    %6 = arith.muli %arg1, %c16_i32 : i32
    %7 = tpu.iota {dimensions = array<i32: 0>} : vector<16x1xi32>
    %8 = vector.broadcast %6 : i32 to vector<16x1xi32>
    %9 = arith.addi %8, %7 : vector<16x1xi32>
    %c20_i32 = arith.constant 20 : i32
    %10 = vector.broadcast %c20_i32 : i32 to vector<16x1xi32>
    %11 = arith.cmpi slt, %9, %10 : vector<16x1xi32>
    %12 = tpu.iota {dimensions = array<i32: 1>} : vector<16x32xi32>
    %cst = arith.constant dense<0xFF800000> : vector<16xf32>
    %13 = vector.multi_reduction <maximumf>, %1, %cst [1] : vector<16x32xf32> to vector<16xf32>
    %14 = vector.shape_cast %13 : vector<16xf32> to vector<16x1xf32>
    %15 = vector.broadcast %14 : vector<16x1xf32> to vector<16x32xf32>
    %16 = arith.subf %1, %15 : vector<16x32xf32>
    %17 = math.exp %16 : vector<16x32xf32>
    %cst_8 = arith.constant dense<0.000000e+00> : vector<16xf32>
    %18 = vector.multi_reduction <add>, %17, %cst_8 [1] : vector<16x32xf32> to vector<16xf32>
    %19 = vector.shape_cast %18 : vector<16xf32> to vector<16x1xf32>
    %20 = math.log %19 : vector<16x1xf32>
    %21 = arith.addf %14, %20 : vector<16x1xf32>
    %22 = vector.broadcast %3 : vector<16x1xi32> to vector<16x32xi32>
    %23 = arith.cmpi eq, %12, %22 : vector<16x32xi32>
    %cst_9 = arith.constant 0.000000e+00 : f32
    %24 = vector.broadcast %cst_9 : f32 to vector<16x32xf32>
    %25 = arith.select %23, %1, %24 : vector<16x32xi1>, vector<16x32xf32>
    %cst_10 = arith.constant dense<0.000000e+00> : vector<16xf32>
    %26 = vector.multi_reduction <add>, %25, %cst_10 [1] : vector<16x32xf32> to vector<16xf32>
    %27 = vector.shape_cast %26 : vector<16xf32> to vector<16x1xf32>
    %cst_11 = arith.constant dense<0.000000e+00> : vector<16xf32>
    %28 = vector.multi_reduction <add>, %1, %cst_11 [1] : vector<16x32xf32> to vector<16xf32>
    %29 = vector.shape_cast %28 : vector<16xf32> to vector<16x1xf32>
    %cst_12 = arith.constant 3.125000e-02 : f32
    %30 = vector.broadcast %cst_12 : f32 to vector<16x1xf32>
    %31 = arith.mulf %29, %30 : vector<16x1xf32>
    %cst_13 = arith.constant 0.899999976 : f32
    %32 = vector.broadcast %cst_13 : f32 to vector<16x1xf32>
    %33 = arith.mulf %32, %27 : vector<16x1xf32>
    %34 = arith.subf %21, %33 : vector<16x1xf32>
    %cst_14 = arith.constant 1.000000e-01 : f32
    %35 = vector.broadcast %cst_14 : f32 to vector<16x1xf32>
    %36 = arith.mulf %35, %31 : vector<16x1xf32>
    %37 = arith.subf %34, %36 : vector<16x1xf32>
    %cst_15 = arith.constant 1.000000e+00 : f32
    %38 = vector.broadcast %cst_15 : f32 to vector<16x1xf32>
    %39 = arith.subf %38, %5 : vector<16x1xf32>
    %cst_16 = arith.constant 1.000000e-01 : f32
    %40 = vector.broadcast %cst_16 : f32 to vector<16x1xf32>
    %41 = arith.mulf %39, %40 : vector<16x1xf32>
    %42 = arith.addf %41, %5 : vector<16x1xf32>
    %43 = vector.broadcast %14 : vector<16x1xf32> to vector<16x32xf32>
    %44 = arith.cmpf oge, %1, %43 : vector<16x32xf32>
    %c32_i32 = arith.constant 32 : i32
    %45 = vector.broadcast %c32_i32 : i32 to vector<16x32xi32>
    %46 = arith.select %44, %12, %45 : vector<16x32xi1>, vector<16x32xi32>
    %cst_17 = arith.constant dense<2147483647> : vector<16xi32>
    %47 = vector.multi_reduction <minsi>, %46, %cst_17 [1] : vector<16x32xi32> to vector<16xi32>
    %48 = vector.shape_cast %47 : vector<16xi32> to vector<16x1xi32>
    %49 = arith.cmpi eq, %48, %3 : vector<16x1xi32>
    %50 = arith.extui %49 : vector<16x1xi1> to vector<16x1xi32>
    %51 = arith.sitofp %50 : vector<16x1xi32> to vector<16x1xf32>
    %52 = arith.mulf %37, %42 : vector<16x1xf32>
    %cst_18 = arith.constant 0.000000e+00 : f32
    %53 = vector.broadcast %cst_18 : f32 to vector<16x1xf32>
    %54 = arith.select %11, %52, %53 : vector<16x1xi1>, vector<16x1xf32>
    %c0_19 = arith.constant 0 : index
    %c0_20 = arith.constant 0 : index
    %c0_21 = arith.constant 0 : index
    %55 = vector.load %arg5[%c0_19, %c0_20, %c0_21] : memref<1x16x1xf32, #tpu.memory_space<vmem>>, vector<1x16x1xf32>
    %56 = vector.shape_cast %55 : vector<1x16x1xf32> to vector<16x1xf32>
    %57 = vector.shape_cast %54 : vector<16x1xf32> to vector<1x16x1xf32>
    tpu.vector_store %arg5[%c0_19, %c0_20, %c0_21], %57 {strides = array<i32>} : memref<1x16x1xf32, #tpu.memory_space<vmem>>, vector<1x16x1xf32>,
    %58 = arith.mulf %51, %5 : vector<16x1xf32>
    %cst_22 = arith.constant 0.000000e+00 : f32
    %59 = vector.broadcast %cst_22 : f32 to vector<16x1xf32>
    %60 = arith.select %11, %58, %59 : vector<16x1xi1>, vector<16x1xf32>
    %c0_23 = arith.constant 0 : index
    %c0_24 = arith.constant 0 : index
    %c0_25 = arith.constant 0 : index
    %61 = vector.load %arg6[%c0_23, %c0_24, %c0_25] : memref<1x16x1xf32, #tpu.memory_space<vmem>>, vector<1x16x1xf32>
    %62 = vector.shape_cast %61 : vector<1x16x1xf32> to vector<16x1xf32>
    %63 = vector.shape_cast %60 : vector<16x1xf32> to vector<1x16x1xf32>
    tpu.vector_store %arg6[%c0_23, %c0_24, %c0_25], %63 {strides = array<i32>} : memref<1x16x1xf32, #tpu.memory_space<vmem>>, vector<1x16x1xf32>,
    return
  }
  func.func @transform_0(%arg0: i32, %arg1: i32) -> (i32, i32, i32) {
    %c0_i32 = arith.constant 0 : i32
    %c0_i32_0 = arith.constant 0 : i32
    return %arg0, %arg1, %c0_i32 : i32, i32, i32
  }
  func.func @transform_1(%arg0: i32, %arg1: i32) -> (i32, i32, i32) {
    %c0_i32 = arith.constant 0 : i32
    %c0_i32_0 = arith.constant 0 : i32
    return %arg0, %arg1, %c0_i32 : i32, i32, i32
  }
  func.func @transform_2(%arg0: i32, %arg1: i32) -> (i32, i32, i32) {
    %c0_i32 = arith.constant 0 : i32
    %c0_i32_0 = arith.constant 0 : i32
    return %arg0, %arg1, %c0_i32 : i32, i32, i32
  }
  func.func @transform_3(%arg0: i32, %arg1: i32) -> (i32, i32, i32) {
    %c0_i32 = arith.constant 0 : i32
    %c0_i32_0 = arith.constant 0 : i32
    return %arg0, %arg1, %c0_i32 : i32, i32, i32
  }
  func.func @transform_4(%arg0: i32, %arg1: i32) -> (i32, i32, i32) {
    %c0_i32 = arith.constant 0 : i32
    %c0_i32_0 = arith.constant 0 : i32
    return %arg0, %arg1, %c0_i32 : i32, i32, i32
  }
}

</mosaic_0001>

<llo_original>
// kernel: mlm_loss.1
$region0: #{mlm_loss.1}
  #allocation0 [shape = 'u32[]', space=smem, size = 0x4, offset = 0x4, fixed_abs, tag = 'smem constant byte address 0x4 - core index']
  #allocation1 [shape = 'u32[72,128]{1,0:T(1,128)}', space=vmem, size = 0x9000, scoped, tag = 'internal scratch']
  %s0 = inlined_call_operand.vmem [shape: f32[2,20,32], index: 0, kind: input, shape index: {}]
  %s1 = inlined_call_operand.vmem [shape: s32[2,20,1], index: 1, kind: input, shape index: {}]
  %s2 = inlined_call_operand.vmem [shape: f32[2,20,1], index: 2, kind: input, shape index: {}]
  %s3 = inlined_call_operand.vmem [shape: f32[2,32,1], index: 3, kind: output, shape index: {0}]
  %s4 = inlined_call_operand.vmem [shape: f32[2,32,1], index: 4, kind: output, shape index: {1}]
  %5 = xla_tuple %s3, %s4
  %s6 = sld [smem:[#allocation0]]
  $region53: #{mlm_loss.1} parent=0
    _
  %s8 = ssub.s32 1, %s6
  %s9 = scalar_select 0, %s8, %s6
  loop: start=0, step=1, limit=6
  $region2: #{mlm_loss.1} parent=0 // loop_pre_header
    _
  $region3: #{mlm_loss.1} parent=0 // loop_header
    %s11 = sphi 0, %s15
    %p12 = scmp.ge.s32.totalorder %s11, 6
    %s18 = sphi 0, %s30
    %s19 = sphi 0, %s26
    %s20 = sphi 0, %s18
    %s21 = sphi 0, %s19
    %s22 = sphi 0, %s20
    %s23 = sphi 0, %s21
    %s35 = sphi 0, %s37
    %s38 = sphi 0, %s35
    %s39 = sphi 0, %s38
    %s55 = sphi 0, %s39
    %s63 = sphi 0, %s65
    %s66 = sphi 0, %s63
    %s67 = sphi 0, %s66
    %s83 = sphi 0, %s67
    %s91 = sphi 0, %s93
    %s94 = sphi 0, %s91
    %s95 = sphi 0, %s94
    %s111 = sphi 0, %s95
    %s119 = sphi 0, %s121
    %s122 = sphi 0, %s119
    %s123 = sphi 0, %s122
    %s139 = sphi 0, %s123
    %s147 = sphi 0, %s149
    %s150 = sphi 0, %s147
    %s151 = sphi 0, %s150
    %s167 = sphi 0, %s151
  $region4: #{mlm_loss.1} parent=0 // loop_header_branch
    %14 = sbr.rel (%p12) target = $region8
  $region5: #{mlm_loss.1} parent=0 // loop_body
    %s16 = ssub.s32 %s11, 1
    %s17 = ssub.s32 %s11, 2
    %s24 = sadd.s32 1, %s19
    %p25 = scmp.ge.s32.totalorder %s24, 2
    %s26 = scalar_select %p25, 0, %s24
    %s27 = sadd.s32 1, %s18
    %s28 = scalar_select %p25, %s27, %s18
    %p29 = scmp.ge.s32.totalorder %s28, 2
    %s30 = scalar_select %p29, 0, %s28
    %s31 = ssub.s32 %s18, %s30
    %s32 = ssub.s32 %s19, %s26
    %s33 = sor.u32 %s31, %s32
    %p34 = scmp.eq.s32.totalorder %s33, 0
    %s36 = sadd.s32 %s35, 1
    %s37 = scalar_select %p34, %s35, %s36
    %p40 = pneg %p34
    %p41 = scmp.eq.s32.totalorder %s11, 3
    %p42 = por %p40, %p41
    %p43 = scmp.ne.s32.totalorder %s35, %s38
    %p44 = scmp.eq.s32.totalorder %s11, 0
    %p45 = por %p43, %p44
    %p46 = scmp.ne.s32.totalorder %s35, %s38
    %p47 = scmp.eq.s32.totalorder %s16, 3
    %p48 = por %p46, %p47
    %p49 = scmp.ne.s32.totalorder %s38, %s39
    %p50 = scmp.eq.s32.totalorder %s16, 0
    %p51 = por %p49, %p50
    %p52 = scmp.ne.s32.totalorder %s38, %s39
    %p53 = scmp.eq.s32.totalorder %s17, 3
    %p54 = por %p52, %p53
    %p56 = scmp.ne.s32.totalorder %s39, %s55
    %p57 = scmp.eq.s32.totalorder %s17, 0
    %p58 = por %p56, %p57
    %s59 = ssub.s32 %s18, %s30
    %s60 = ssub.s32 %s19, %s26
    %s61 = sor.u32 %s59, %s60
    %p62 = scmp.eq.s32.totalorder %s61, 0
    %s64 = sadd.s32 %s63, 1
    %s65 = scalar_select %p62, %s63, %s64
    %p68 = pneg %p62
    %p69 = scmp.eq.s32.totalorder %s11, 3
    %p70 = por %p68, %p69
    %p71 = scmp.ne.s32.totalorder %s63, %s66
    %p72 = scmp.eq.s32.totalorder %s11, 0
    %p73 = por %p71, %p72
    %p74 = scmp.ne.s32.totalorder %s63, %s66
    %p75 = scmp.eq.s32.totalorder %s16, 3
    %p76 = por %p74, %p75
    %p77 = scmp.ne.s32.totalorder %s66, %s67
    %p78 = scmp.eq.s32.totalorder %s16, 0
    %p79 = por %p77, %p78
    %p80 = scmp.ne.s32.totalorder %s66, %s67
    %p81 = scmp.eq.s32.totalorder %s17, 3
    %p82 = por %p80, %p81
    %p84 = scmp.ne.s32.totalorder %s67, %s83
    %p85 = scmp.eq.s32.totalorder %s17, 0
    %p86 = por %p84, %p85
    %s87 = ssub.s32 %s18, %s30
    %s88 = ssub.s32 %s19, %s26
    %s89 = sor.u32 %s87, %s88
    %p90 = scmp.eq.s32.totalorder %s89, 0
    %s92 = sadd.s32 %s91, 1
    %s93 = scalar_select %p90, %s91, %s92
    %p96 = pneg %p90
    %p97 = scmp.eq.s32.totalorder %s11, 3
    %p98 = por %p96, %p97
    %p99 = scmp.ne.s32.totalorder %s91, %s94
    %p100 = scmp.eq.s32.totalorder %s11, 0
    %p101 = por %p99, %p100
    %p102 = scmp.ne.s32.totalorder %s91, %s94
    %p103 = scmp.eq.s32.totalorder %s16, 3
    %p104 = por %p102, %p103
    %p105 = scmp.ne.s32.totalorder %s94, %s95
    %p106 = scmp.eq.s32.totalorder %s16, 0
    %p107 = por %p105, %p106
    %p108 = scmp.ne.s32.totalorder %s94, %s95
    %p109 = scmp.eq.s32.totalorder %s17, 3
    %p110 = por %p108, %p109
    %p112 = scmp.ne.s32.totalorder %s95, %s111
    %p113 = scmp.eq.s32.totalorder %s17, 0
    %p114 = por %p112, %p113
    %s115 = ssub.s32 %s18, %s30
    %s116 = ssub.s32 %s19, %s26
    %s117 = sor.u32 %s115, %s116
    %p118 = scmp.eq.s32.totalorder %s117, 0
    %s120 = sadd.s32 %s119, 1
    %s121 = scalar_select %p118, %s119, %s120
    %p124 = pneg %p118
    %p125 = scmp.eq.s32.totalorder %s11, 3
    %p126 = por %p124, %p125
    %p127 = scmp.ne.s32.totalorder %s119, %s122
    %p128 = scmp.eq.s32.totalorder %s11, 0
    %p129 = por %p127, %p128
    %p130 = scmp.ne.s32.totalorder %s119, %s122
    %p131 = scmp.eq.s32.totalorder %s16, 3
    %p132 = por %p130, %p131
    %p133 = scmp.ne.s32.totalorder %s122, %s123
    %p134 = scmp.eq.s32.totalorder %s16, 0
    %p135 = por %p133, %p134
    %p136 = scmp.ne.s32.totalorder %s122, %s123
    %p137 = scmp.eq.s32.totalorder %s17, 3
    %p138 = por %p136, %p137
    %p140 = scmp.ne.s32.totalorder %s123, %s139
    %p141 = scmp.eq.s32.totalorder %s17, 0
    %p142 = por %p140, %p141
    %s143 = ssub.s32 %s18, %s30
    %s144 = ssub.s32 %s19, %s26
    %s145 = sor.u32 %s143, %s144
    %p146 = scmp.eq.s32.totalorder %s145, 0
    %s148 = sadd.s32 %s147, 1
    %s149 = scalar_select %p146, %s147, %s148
    %p152 = pneg %p146
    %p153 = scmp.eq.s32.totalorder %s11, 3
    %p154 = por %p152, %p153
    %p155 = scmp.ne.s32.totalorder %s147, %s150
    %p156 = scmp.eq.s32.totalorder %s11, 0
    %p157 = por %p155, %p156
    %p158 = scmp.ne.s32.totalorder %s147, %s150
    %p159 = scmp.eq.s32.totalorder %s16, 3
    %p160 = por %p158, %p159
    %p161 = scmp.ne.s32.totalorder %s150, %s151
    %p162 = scmp.eq.s32.totalorder %s16, 0
    %p163 = por %p161, %p162
    %p164 = scmp.ne.s32.totalorder %s150, %s151
    %p165 = scmp.eq.s32.totalorder %s17, 3
    %p166 = por %p164, %p165
    %p168 = scmp.ne.s32.totalorder %s151, %s167
    %p169 = scmp.eq.s32.totalorder %s17, 0
    %p170 = por %p168, %p169
    %p171 = scmp.le.s32.totalorder 1, %s11
    %p172 = scmp.lt.s32.totalorder %s11, 5
    %p173 = pnand %p171, %p172
    %p174 = pneg %p173
    // Predicated region
    $region9: #{mlm_loss.1} parent=5 // pred_check
      _
    $region10: #{mlm_loss.1} parent=5 // pred_check_branch
      %176 = sbr.rel (%p173) target = $region12
    $region11: #{mlm_loss.1} parent=5 // pred_region
      %s177 = ssub.s32 %s11, 1
    $region12: #{mlm_loss.1} parent=5 // pred_fallthru
      _
    %p178 = scmp.lt.s32.totalorder %s11, 4
    // Predicated region
    $region13: #{mlm_loss.1} parent=5 // pred_check
      %p179 = pneg %p178
    $region14: #{mlm_loss.1} parent=5 // pred_check_branch
      %181 = sbr.rel (%p179) target = $region16
    $region15: #{mlm_loss.1} parent=5 // pred_region
      // Predicated region
      $region17: #{mlm_loss.1} parent=15 // pred_check
        %p182 = pneg %p45
      $region18: #{mlm_loss.1} parent=15 // pred_check_branch
        %184 = sbr.rel (%p182) target = $region20
      $region19: #{mlm_loss.1} parent=15 // pred_region
        %s185 = smul.u32 2, %s19
        %s186 = ssub.s32 3, %s185
        %p187 = scmp.lt.s32.totalorder %s186, 2
        %s188 = scalar_select %p187, %s186, 2
        %s189 = smul.u32 8, %s188
        %p190 = scmp.lt.s32.totalorder %s18, 1
        %s191 = scalar_select %p190, %s18, 1
        %p192 = scmp.lt.s32.totalorder %s185, 2
        %s193 = scalar_select %p192, %s185, 2
        %s194 = smul.addr %s191, 3
        %s195 = sadd.s32 %s193, %s194
        %s196 = smul.addr %s195, 8
        %s197 = scalar_lea.vmem %s0, %s196
        %s198 = smul.u32 2, %s19
        %s199 = ssub.s32 3, %s198
        %p200 = scmp.lt.s32.totalorder %s199, 2
        %s201 = scalar_select %p200, %s199, 2
        %s202 = smul.u32 8, %s201
      $region20: #{mlm_loss.1} parent=15 // pred_fallthru
        _
      // Predicated region
      $region21: #{mlm_loss.1} parent=15 // pred_check
        %p203 = pneg %p73
      $region22: #{mlm_loss.1} parent=15 // pred_check_branch
        %205 = sbr.rel (%p203) target = $region24
      $region23: #{mlm_loss.1} parent=15 // pred_region
        %s206 = smul.u32 2, %s19
        %s207 = ssub.s32 3, %s206
        %p208 = scmp.lt.s32.totalorder %s207, 2
        %s209 = scalar_select %p208, %s207, 2
        %s210 = smul.u32 8, %s209
        %p211 = scmp.lt.s32.totalorder %s18, 1
        %s212 = scalar_select %p211, %s18, 1
        %p213 = scmp.lt.s32.totalorder %s206, 2
        %s214 = scalar_select %p213, %s206, 2
        %s215 = smul.addr %s212, 3
        %s216 = sadd.s32 %s214, %s215
        %s217 = smul.addr %s216, 8
        %s218 = scalar_lea.vmem %s1, %s217
        %s219 = smul.u32 2, %s19
        %s220 = ssub.s32 3, %s219
        %p221 = scmp.lt.s32.totalorder %s220, 2
        %s222 = scalar_select %p221, %s220, 2
        %s223 = smul.u32 8, %s222
      $region24: #{mlm_loss.1} parent=15 // pred_fallthru
        _
      // Predicated region
      $region25: #{mlm_loss.1} parent=15 // pred_check
        %p224 = pneg %p101
      $region26: #{mlm_loss.1} parent=15 // pred_check_branch
        %226 = sbr.rel (%p224) target = $region28
      $region27: #{mlm_loss.1} parent=15 // pred_region
        %s227 = smul.u32 2, %s19
        %s228 = ssub.s32 3, %s227
        %p229 = scmp.lt.s32.totalorder %s228, 2
        %s230 = scalar_select %p229, %s228, 2
        %s231 = smul.u32 8, %s230
        %p232 = scmp.lt.s32.totalorder %s18, 1
        %s233 = scalar_select %p232, %s18, 1
        %p234 = scmp.lt.s32.totalorder %s227, 2
        %s235 = scalar_select %p234, %s227, 2
        %s236 = smul.addr %s233, 3
        %s237 = sadd.s32 %s235, %s236
        %s238 = smul.addr %s237, 8
        %s239 = scalar_lea.vmem %s2, %s238
        %s240 = smul.u32 2, %s19
        %s241 = ssub.s32 3, %s240
        %p242 = scmp.lt.s32.totalorder %s241, 2
        %s243 = scalar_select %p242, %s241, 2
        %s244 = smul.u32 8, %s243
      $region28: #{mlm_loss.1} parent=15 // pred_fallthru
        _
    $region16: #{mlm_loss.1} parent=5 // pred_fallthru
      _
    %p245 = scmp.le.s32.totalorder 1, %s11
    %p246 = scmp.lt.s32.totalorder %s11, 5
    %p247 = pnand %p245, %p246
    %p248 = pneg %p247
    // Predicated region
    $region29: #{mlm_loss.1} parent=5 // pred_check
      _
    $region30: #{mlm_loss.1} parent=5 // pred_check_branch
      %250 = sbr.rel (%p247) target = $region32
    $region31: #{mlm_loss.1} parent=5 // pred_region
      %s251 = ssub.s32 %s11, 1
      %s252 = smul.u32 2, %s21
      %s253 = ssub.s32 3, %s252
      %p254 = scmp.lt.s32.totalorder %s253, 2
      %s255 = scalar_select %p254, %s253, 2
      %s256 = smul.u32 8, %s255
      %p257 = scmp.lt.s32.totalorder %s20, 1
      %s258 = scalar_select %p257, %s20, 1
      %p259 = scmp.lt.s32.totalorder %s252, 2
      %s260 = scalar_select %p259, %s252, 2
      %s261 = smul.addr %s258, 3
      %s262 = sadd.s32 %s260, %s261
      %s263 = smul.addr %s262, 8
      %s264 = scalar_lea.vmem %s0, %s263
      %p265 = pneg %p51
      %p266 = pneg %p48
      %s267 = smul.u32 2, %s21
      %s268 = ssub.s32 3, %s267
      %p269 = scmp.lt.s32.totalorder %s268, 2
      %s270 = scalar_select %p269, %s268, 2
      %s271 = smul.u32 8, %s270
      %p272 = scmp.lt.s32.totalorder %s20, 1
      %s273 = scalar_select %p272, %s20, 1
      %p274 = scmp.lt.s32.totalorder %s267, 2
      %s275 = scalar_select %p274, %s267, 2
      %s276 = smul.addr %s273, 3
      %s277 = sadd.s32 %s275, %s276
      %s278 = smul.addr %s277, 8
      %s279 = scalar_lea.vmem %s1, %s278
      %p280 = pneg %p79
      %p281 = pneg %p76
      %s282 = smul.u32 2, %s21
      %s283 = ssub.s32 3, %s282
      %p284 = scmp.lt.s32.totalorder %s283, 2
      %s285 = scalar_select %p284, %s283, 2
      %s286 = smul.u32 8, %s285
      %p287 = scmp.lt.s32.totalorder %s20, 1
      %s288 = scalar_select %p287, %s20, 1
      %p289 = scmp.lt.s32.totalorder %s282, 2
      %s290 = scalar_select %p289, %s282, 2
      %s291 = smul.addr %s288, 3
      %s292 = sadd.s32 %s290, %s291
      %s293 = smul.addr %s292, 8
      %s294 = scalar_lea.vmem %s2, %s293
      %p295 = pneg %p107
      %p296 = pneg %p104
      %p297 = pneg %p135
      %p298 = pneg %p132
      %s299 = smul.u32 2, %s21
      %p300 = scmp.lt.s32.totalorder %s20, 1
      %s301 = scalar_select %p300, %s20, 1
      %p302 = scmp.lt.s32.totalorder %s299, 3
      %s303 = scalar_select %p302, %s299, 3
      %s304 = smul.addr %s301, 4
      %s305 = sadd.s32 %s303, %s304
      %s306 = smul.addr %s305, 8
      %s307 = scalar_lea.vmem %s3, %s306
      %p308 = pneg %p163
      %p309 = pneg %p160
      %s310 = smul.u32 2, %s21
      %p311 = scmp.lt.s32.totalorder %s20, 1
      %s312 = scalar_select %p311, %s20, 1
      %p313 = scmp.lt.s32.totalorder %s310, 3
      %s314 = scalar_select %p313, %s310, 3
      %s315 = smul.addr %s312, 4
      %s316 = sadd.s32 %s314, %s315
      %s317 = smul.addr %s316, 8
      %s318 = scalar_lea.vmem %s4, %s317
      %s319 = smul.u32 2, %s21
      %s320 = ssub.s32 3, %s319
      %p321 = scmp.lt.s32.totalorder %s320, 2
      %s322 = scalar_select %p321, %s320, 2
      %s323 = smul.u32 8, %s322
      %p324 = scmp.lt.s32.totalorder %s20, 1
      %s325 = scalar_select %p324, %s20, 1
      %p326 = scmp.lt.s32.totalorder %s319, 2
      %s327 = scalar_select %p326, %s319, 2
      %s328 = smul.addr %s325, 3
      %s329 = sadd.s32 %s327, %s328
      %s330 = smul.addr %s329, 8
      %s331 = scalar_lea.vmem %s0, %s330
      %s332 = smul.u32 2, %s21
      %s333 = ssub.s32 3, %s332
      %p334 = scmp.lt.s32.totalorder %s333, 2
      %s335 = scalar_select %p334, %s333, 2
      %s336 = smul.u32 8, %s335
      %s337 = smul.u32 2, %s21
      %s338 = ssub.s32 3, %s337
      %p339 = scmp.lt.s32.totalorder %s338, 2
      %s340 = scalar_select %p339, %s338, 2
      %s341 = smul.u32 8, %s340
      %p342 = scmp.lt.s32.totalorder %s20, 1
      %s343 = scalar_select %p342, %s20, 1
      %p344 = scmp.lt.s32.totalorder %s337, 2
      %s345 = scalar_select %p344, %s337, 2
      %s346 = smul.addr %s343, 3
      %s347 = sadd.s32 %s345, %s346
      %s348 = smul.addr %s347, 8
      %s349 = scalar_lea.vmem %s1, %s348
      %s350 = smul.u32 2, %s21
      %s351 = ssub.s32 3, %s350
      %p352 = scmp.lt.s32.totalorder %s351, 2
      %s353 = scalar_select %p352, %s351, 2
      %s354 = smul.u32 8, %s353
      %s355 = smul.u32 2, %s21
      %s356 = ssub.s32 3, %s355
      %p357 = scmp.lt.s32.totalorder %s356, 2
      %s358 = scalar_select %p357, %s356, 2
      %s359 = smul.u32 8, %s358
      %p360 = scmp.lt.s32.totalorder %s20, 1
      %s361 = scalar_select %p360, %s20, 1
      %p362 = scmp.lt.s32.totalorder %s355, 2
      %s363 = scalar_select %p362, %s355, 2
      %s364 = smul.addr %s361, 3
      %s365 = sadd.s32 %s363, %s364
      %s366 = smul.addr %s365, 8
      %s367 = scalar_lea.vmem %s2, %s366
      %s368 = smul.u32 2, %s21
      %s369 = ssub.s32 3, %s368
      %p370 = scmp.lt.s32.totalorder %s369, 2
      %s371 = scalar_select %p370, %s369, 2
      %s372 = smul.u32 8, %s371
      %s373 = smul.u32 2, %s21
      %p374 = scmp.lt.s32.totalorder %s20, 1
      %s375 = scalar_select %p374, %s20, 1
      %p376 = scmp.lt.s32.totalorder %s373, 3
      %s377 = scalar_select %p376, %s373, 3
      %s378 = smul.addr %s375, 4
      %s379 = sadd.s32 %s377, %s378
      %s380 = smul.addr %s379, 8
      %s381 = scalar_lea.vmem %s3, %s380
      %s382 = smul.u32 2, %s21
      %s383 = smul.u32 2, %s21
      %p384 = scmp.lt.s32.totalorder %s20, 1
      %s385 = scalar_select %p384, %s20, 1
      %p386 = scmp.lt.s32.totalorder %s383, 3
      %s387 = scalar_select %p386, %s383, 3
      %s388 = smul.addr %s385, 4
      %s389 = sadd.s32 %s387, %s388
      %s390 = smul.addr %s389, 8
      %s391 = scalar_lea.vmem %s4, %s390
      %s392 = smul.u32 2, %s21
      %v393 = vld [vmem:[%s331] sm:$0xff]
      %v394 = vld [vmem:[%s331 + $0x8] sm:$0xff]
      %v395 = vld [vmem:[%s349] sm:$0xff]
      %v396 = vld [vmem:[%s349 + $0x8] sm:$0xff]
      %v397 = vld [vmem:[%s367] sm:$0xff]
      %v398 = vld [vmem:[%s367 + $0x8] sm:$0xff]
      %s399 = smul.u32 %s21, 16
      %v400 = vlaneseq
      %v401 = vshrl.u32 %v400, 7
      %v402 = vadd.s32 %v401, 8
      %v403 = vstv %s399
      %v404 = vadd.s32 %v403, %v401
      %v405 = vadd.s32 %v403, %v402
      %vm406 = vcmp.lt.s32.totalorder %v404, 20
      %vm407 = vcmp.lt.s32.totalorder %v405, 20
      %v408 = vlaneseq
      %v409 = vand.u32 %v408, 127
      %vm410 = vcmask 261120
      %v411 = vsel %vm410, %v393, -inf
      %412 = vmax.xlane.f32.xlu0 %v411
      %v413 = vpop.xlane.xlu0 %412
      %v414 = vsel %vm410, %v394, -inf
      %415 = vmax.xlane.f32.xlu0 %v414
      %v416 = vpop.xlane.xlu0 %415
      %v417 = vsub.f32 %v393, %v413
      %v418 = vsub.f32 %v394, %v416
      %v419 = vmul.f32 %v417, 1.442695
      %v420 = vpow.pop %v419
      %v421 = vmul.f32 %v418, 1.442695
      %v422 = vpow.pop %v421
      %v423 = vsel %vm410, %v420, 0.0
      %424 = vadd.xlane.f32.xlu0 %v423
      %v425 = vpop.xlane.xlu0 %424
      %v426 = vsel %vm410, %v422, 0.0
      %427 = vadd.xlane.f32.xlu0 %v426
      %v428 = vpop.xlane.xlu0 %427
      %v429 = vlog2.pop %v425
      %v430 = vmul.f32 %v429, 0.6931472
      %v431 = vlog2.pop %v428
      %v432 = vmul.f32 %v431, 0.6931472
      %v433 = vadd.f32 %v413, %v430
      %v434 = vadd.f32 %v416, %v432
      %435 = vset.pattern.permute.xlu0 0
      %436 = vperm.xlu0 %435, %v395
      %v437 = vpop.permute.xlu0 %436
      %438 = vset.pattern.permute.xlu0 0
      %439 = vperm.xlu0 %438, %v396
      %v440 = vpop.permute.xlu0 %439
      %vm441 = vcmp.eq.s32.totalorder %v409, %v437
      %vm442 = vcmp.eq.s32.totalorder %v409, %v440
      %v443 = vsel %vm441, %v393, 0.0
      %v444 = vsel %vm442, %v394, 0.0
      %v445 = vsel %vm410, %v443, 0.0
      %446 = vadd.xlane.f32.xlu0 %v445
      %v447 = vpop.xlane.xlu0 %446
      %v448 = vsel %vm410, %v444, 0.0
      %449 = vadd.xlane.f32.xlu0 %v448
      %v450 = vpop.xlane.xlu0 %449
      %v451 = vsel %vm410, %v393, 0.0
      %452 = vadd.xlane.f32.xlu0 %v451
      %v453 = vpop.xlane.xlu0 %452
      %v454 = vsel %vm410, %v394, 0.0
      %455 = vadd.xlane.f32.xlu0 %v454
      %v456 = vpop.xlane.xlu0 %455
      %v457 = vmul.f32 %v453, 0.03125
      %v458 = vmul.f32 %v456, 0.03125
      %v459 = vmul.f32 %v447, 0.9
      %v460 = vmul.f32 %v450, 0.9
      %v461 = vsub.f32 %v433, %v459
      %v462 = vsub.f32 %v434, %v460
      %v463 = vmul.f32 %v457, 0.1
      %v464 = vmul.f32 %v458, 0.1
      %v465 = vsub.f32 %v461, %v463
      %v466 = vsub.f32 %v462, %v464
      %v467 = vsub.f32 1.0, %v397
      %v468 = vsub.f32 1.0, %v398
      %v469 = vmul.f32 %v467, 0.1
      %v470 = vmul.f32 %v468, 0.1
      %v471 = vadd.f32 %v469, %v397
      %v472 = vadd.f32 %v470, %v398
      %vm473 = vcmp.ge.f32.partialorder %v393, %v413
      %vm474 = vcmp.ge.f32.partialorder %v394, %v416
      %v475 = vsel %vm473, %v409, 32
      %v476 = vsel %vm474, %v409, 32
      %v477 = vsel %vm410, %v475, 2147483647
      %v478 = vand.u32 %v477, 65535
      %v479 = vshra.s32 %v477, 16
      %v480 = vcvt.s32.f32 %v478
      %v481 = vcvt.s32.f32 %v479
      %482 = vmin.xlane.f32.xlu0 %v481
      %v483 = vpop.xlane.xlu0 %482
      %vm484 = vcmp.eq.f32.partialorder %v481, %v483
      %v485 = vsel %vm484, %v480, inf
      %486 = vmin.xlane.f32.xlu0 %v485
      %v487 = vpop.xlane.xlu0 %486
      %v488 = vcvt.f32.s32 %v487
      %v489 = vcvt.f32.s32 %v483
      %v490 = vshll.u32 %v489, 16
      %v491 = vadd.s32 %v490, %v488
      %v492 = vsel %vm410, %v476, 2147483647
      %v493 = vand.u32 %v492, 65535
      %v494 = vshra.s32 %v492, 16
      %v495 = vcvt.s32.f32 %v493
      %v496 = vcvt.s32.f32 %v494
      %497 = vmin.xlane.f32.xlu0 %v496
      %v498 = vpop.xlane.xlu0 %497
      %vm499 = vcmp.eq.f32.partialorder %v496, %v498
      %v500 = vsel %vm499, %v495, inf
      %501 = vmin.xlane.f32.xlu0 %v500
      %v502 = vpop.xlane.xlu0 %501
      %v503 = vcvt.f32.s32 %v502
      %v504 = vcvt.f32.s32 %v498
      %v505 = vshll.u32 %v504, 16
      %v506 = vadd.s32 %v505, %v503
      %vm507 = vcmp.eq.s32.totalorder %v491, %v395
      %vm508 = vcmp.eq.s32.totalorder %v506, %v396
      %v509 = vsel %vm507, 1, 0
      %v510 = vsel %vm508, 1, 0
      %v511 = vcvt.s32.f32 %v509
      %v512 = vcvt.s32.f32 %v510
      %v513 = vmul.f32 %v465, %v471
      %v514 = vmul.f32 %v466, %v472
      %v515 = vsel %vm406, %v513, 0.0
      %v516 = vsel %vm407, %v514, 0.0
      %vm517 = vcmask 7168
      %518 = vst.msk [vmem:[%s381] sm:$0xff] %vm517, %v515
      %519 = vst.msk [vmem:[%s381 + $0x8] sm:$0xff] %vm517, %v516
      %v520 = vmul.f32 %v511, %v397
      %v521 = vmul.f32 %v512, %v398
      %v522 = vsel %vm406, %v520, 0.0
      %v523 = vsel %vm407, %v521, 0.0
      %524 = vst.msk [vmem:[%s391] sm:$0xff] %vm517, %v522
      %525 = vst.msk [vmem:[%s391 + $0x8] sm:$0xff] %vm517, %v523
      %s526 = smul.u32 2, %s21
      %p527 = scmp.lt.s32.totalorder %s20, 1
      %s528 = scalar_select %p527, %s20, 1
      %p529 = scmp.lt.s32.totalorder %s526, 3
      %s530 = scalar_select %p529, %s526, 3
      %s531 = smul.addr %s528, 4
      %s532 = sadd.s32 %s530, %s531
      %s533 = smul.addr %s532, 8
      %s534 = scalar_lea.vmem %s3, %s533
      %s535 = smul.u32 2, %s21
      %p536 = scmp.lt.s32.totalorder %s20, 1
      %s537 = scalar_select %p536, %s20, 1
      %p538 = scmp.lt.s32.totalorder %s535, 3
      %s539 = scalar_select %p538, %s535, 3
      %s540 = smul.addr %s537, 4
      %s541 = sadd.s32 %s539, %s540
      %s542 = smul.addr %s541, 8
      %s543 = scalar_lea.vmem %s4, %s542
      // Predicated region
      $region33: #{mlm_loss.1} parent=31 // pred_check
        %p544 = pneg %p132
      $region34: #{mlm_loss.1} parent=31 // pred_check_branch
        %546 = sbr.rel (%p544) target = $region36
      $region35: #{mlm_loss.1} parent=31 // pred_region
        %s547 = smul.u32 2, %s21
      $region36: #{mlm_loss.1} parent=31 // pred_fallthru
        _
      // Predicated region
      $region37: #{mlm_loss.1} parent=31 // pred_check
        %p548 = pneg %p160
      $region38: #{mlm_loss.1} parent=31 // pred_check_branch
        %550 = sbr.rel (%p548) target = $region40
      $region39: #{mlm_loss.1} parent=31 // pred_region
        %s551 = smul.u32 2, %s21
      $region40: #{mlm_loss.1} parent=31 // pred_fallthru
        _
    $region32: #{mlm_loss.1} parent=5 // pred_fallthru
      _
    %p552 = scmp.le.s32.totalorder 2, %s11
    // Predicated region
    $region41: #{mlm_loss.1} parent=5 // pred_check
      %p553 = pneg %p552
    $region42: #{mlm_loss.1} parent=5 // pred_check_branch
      %555 = sbr.rel (%p553) target = $region44
    $region43: #{mlm_loss.1} parent=5 // pred_region
      %s556 = ssub.s32 %s11, 2
      // Predicated region
      $region45: #{mlm_loss.1} parent=43 // pred_check
        %p557 = pneg %p138
      $region46: #{mlm_loss.1} parent=43 // pred_check_branch
        %559 = sbr.rel (%p557) target = $region48
      $region47: #{mlm_loss.1} parent=43 // pred_region
        %s560 = smul.u32 2, %s23
        %p561 = scmp.lt.s32.totalorder %s22, 1
        %s562 = scalar_select %p561, %s22, 1
        %p563 = scmp.lt.s32.totalorder %s560, 3
        %s564 = scalar_select %p563, %s560, 3
        %s565 = smul.addr %s562, 4
        %s566 = sadd.s32 %s564, %s565
        %s567 = smul.addr %s566, 8
        %s568 = scalar_lea.vmem %s3, %s567
      $region48: #{mlm_loss.1} parent=43 // pred_fallthru
        _
      // Predicated region
      $region49: #{mlm_loss.1} parent=43 // pred_check
        %p569 = pneg %p166
      $region50: #{mlm_loss.1} parent=43 // pred_check_branch
        %571 = sbr.rel (%p569) target = $region52
      $region51: #{mlm_loss.1} parent=43 // pred_region
        %s572 = smul.u32 2, %s23
        %p573 = scmp.lt.s32.totalorder %s22, 1
        %s574 = scalar_select %p573, %s22, 1
        %p575 = scmp.lt.s32.totalorder %s572, 3
        %s576 = scalar_select %p575, %s572, 3
        %s577 = smul.addr %s574, 4
        %s578 = sadd.s32 %s576, %s577
        %s579 = smul.addr %s578, 8
        %s580 = scalar_lea.vmem %s4, %s579
      $region52: #{mlm_loss.1} parent=43 // pred_fallthru
        _
    $region44: #{mlm_loss.1} parent=5 // pred_fallthru
      _
  $region6: #{mlm_loss.1} parent=0 // loop_footer
    %s15 = sadd.s32 1, %s11
  $region7: #{mlm_loss.1} parent=0 // loop_footer_branch
    %10 = sbr.rel target = $region3
  $region8: #{mlm_loss.1} parent=0 // loop_exit
    _

</llo_original>
